<compile_context>
chip_gen: v6e
topology: v6e:2x2x1
jax: 0.10.0
libtpu: 0.0.40
codegen_flags: <defaults>
</compile_context>

<pallas_src>
import functools

import jax
import jax.numpy as jnp
from jax.experimental import pallas as pl
from jax.experimental.pallas import tpu as pltpu

_LANE = 128
_SUBLANE = 8
_MAX_UNROLL_SLICES = 32      # max 128-lane slices accumulated per kernel call


def _round_up(a, b):
    return (a + b - 1) // b * b


def _round_down(a, b):
    return a // b * b


def _concat_pool_kernel(x_ref, avg_ref, max_ref, sum_acc, max_acc, *,
                        nfull, rem, inv_hw):
    # x_ref: (tile_rows, hw_block); grid = (row_tiles, hw_tiles), hw axis last.
    k = pl.program_id(1)

    @pl.when(k == 0)
    def _init():
        sum_acc[...] = jnp.zeros_like(sum_acc)
        max_acc[...] = jnp.full_like(max_acc, -jnp.inf)

    # Pure-VALU accumulation: element-wise add / max per 128-lane slice.  The
    # f32 widening is folded into each slice so no full f32 copy of the block
    # is materialized; max accumulates in the input dtype (exact for max).
    for j in range(nfull):
        s = x_ref[:, j * _LANE:(j + 1) * _LANE]
        sum_acc[...] += s.astype(jnp.float32)
        max_acc[...] = jnp.maximum(max_acc[...], s)
    if rem:
        # Partial last slice (hw not a multiple of 128): masked partial-lane
        # accumulate; untouched lanes stay 0 / -inf and are harmless at reduce.
        s = x_ref[:, nfull * _LANE:nfull * _LANE + rem]
        sum_acc[:, :rem] += s.astype(jnp.float32)
        max_acc[:, :rem] = jnp.maximum(max_acc[:, :rem], s)

    @pl.when(k == pl.num_programs(1) - 1)
    def _finalize():
        # One cross-lane (XLU) reduce + one sublane->lane relayout per row tile.
        row_sum = jnp.sum(sum_acc[...], axis=-1)          # (tile_rows,) f32
        row_max = jnp.max(max_acc[...], axis=-1)          # (tile_rows,) native
        avg_ref[...] = (row_sum * inv_hw)[None, :].astype(avg_ref.dtype)
        max_ref[...] = row_max[None, :].astype(max_ref.dtype)


def _tpu_vmem_and_cores():
    """(vmem_capacity_bytes, num_tensorcores) with conservative fallbacks."""
    vmem = 64 * 1024 * 1024
    try:
        vmem = int(pltpu.get_tpu_info().vmem_capacity_bytes)
    except Exception:
        pass  # assume the smallest (v7x-like) VMEM if the query is unavailable
    # v7x: 64 MiB VMEM per TensorCore, 2 TCs/chip; v5e/v6e: 128 MiB, 1 TC.
    num_tc = 2 if vmem <= 96 * 1024 * 1024 else 1
    return vmem, num_tc


def _choose_tiles(rows, hw, itemsize, max_itemsize, vmem_cap, num_tc):
    """Returns (tile_rows, hw_block); tile_rows == 0 => pure-JAX fallback."""
    row_gran = max(_SUBLANE, 32 // itemsize)   # sublane packing granularity
    if rows < row_gran:
        return 0, hw

    # ---- reduction-axis (H*W) blocking ----
    if hw % _LANE == 0:
        if hw <= _MAX_UNROLL_SLICES * _LANE:
            hw_block = hw
        else:
            n_lanes = hw // _LANE
            best = 1
            for d in range(1, _MAX_UNROLL_SLICES + 1):
                if n_lanes % d == 0:
                    best = d
            hw_block = best * _LANE
    else:
        if hw > _MAX_UNROLL_SLICES * _LANE:
            # TODO(synk): large H*W that is not a multiple of 128 needs a
            # masked, grid-tiled reduction axis; fall back to plain JAX there.
            return 0, hw
        hw_block = hw
        # TODO(synk): for tiny H*W (e.g. 7x7) pack several channel planes per
        # DMA "super-row" + segmented reduce to restore >=512B DMA bursts.
    hw_pad = _round_up(hw_block, _LANE)        # true lane-padded VMEM width

    # ---- rows per tile from the real (lane-padded) per-row VMEM cost ----
    per_row = (2 * hw_pad * itemsize                 # double-buffered input
               + _LANE * (4 + max_itemsize)          # f32 sum + native max acc
               + 2 * 2 * _SUBLANE * itemsize)        # two (1,tile_rows) outputs
    budget = min(vmem_cap // 2, 64 * 1024 * 1024)    # ~32 MiB v7x, ~64 MiB v5e/v6e
    tile_rows = _round_down(budget // per_row, row_gran)
    if tile_rows < row_gran:
        return 0, hw_block

    rows_aligned = _round_down(rows, row_gran)
    tile_rows = min(tile_rows, rows_aligned)
    if num_tc > 1 and rows_aligned >= num_tc * row_gran:
        # Give every TensorCore at least one row tile on the "parallel" axis.
        tile_rows = min(tile_rows, _round_down(rows_aligned // num_tc, row_gran))
    if tile_rows >= _LANE:
        tile_rows = _round_down(tile_rows, _LANE)    # lane-dense output rows
    return tile_rows, hw_block


def adaptive_concat_pool2d(x):
    """x: (N, C, H, W) -> (N, 2*C, 1, 1), matching PyTorch AdaptiveConcatPool2d."""
    N, C, H, W = x.shape
    rows, hw = N * C, H * W
    itemsize = jnp.dtype(x.dtype).itemsize
    inv_hw = 1.0 / float(hw)
    max_dtype = x.dtype if jnp.issubdtype(x.dtype, jnp.floating) else jnp.float32
    max_itemsize = jnp.dtype(max_dtype).itemsize

    x2d = x.reshape(rows, hw)  # free: contiguous row-major collapse

    vmem_cap, num_tc = _tpu_vmem_and_cores()
    tile_rows, hw_block = _choose_tiles(rows, hw, itemsize, max_itemsize,
                                        vmem_cap, num_tc)

    if tile_rows == 0:
        num_row_tiles, rows_main = 0, 0
    else:
        num_row_tiles = rows // tile_rows
        rows_main = num_row_tiles * tile_rows

    if rows_main == 0:
        avg_rows = jnp.zeros((0,), x.dtype)
        max_rows = jnp.zeros((0,), x.dtype)
    else:
        num_hw_tiles = hw // hw_block
        nfull, rem = hw_block // _LANE, hw_block % _LANE

        # Actual (lane-padded) working set -> explicit scoped-VMEM limit.
        hw_pad = _round_up(hw_block, _LANE)
        working = (2 * tile_rows * hw_pad * itemsize
                   + tile_rows * _LANE * (4 + max_itemsize)
                   + 2 * 2 * _SUBLANE * _round_up(tile_rows, _LANE) * itemsize)
        vmem_limit = int(min(vmem_cap - 2 * 1024 * 1024,
                             working + 16 * 1024 * 1024))

        kernel = functools.partial(_concat_pool_kernel,
                                   nfull=nfull, rem=rem, inv_hw=inv_hw)
        avg_out, max_out = pl.pallas_call(
            kernel,
            out_shape=(
                jax.ShapeDtypeStruct((num_row_tiles, tile_rows), x.dtype),
                jax.ShapeDtypeStruct((num_row_tiles, tile_rows), x.dtype),
            ),
            grid_spec=pltpu.PrefetchScalarGridSpec(
                num_scalar_prefetch=0,
                grid=(num_row_tiles, num_hw_tiles),
                in_specs=[pl.BlockSpec((tile_rows, hw_block),
                                       lambda i, k: (i, k))],
                out_specs=[
                    pl.BlockSpec((1, tile_rows), lambda i, k: (i, 0)),
                    pl.BlockSpec((1, tile_rows), lambda i, k: (i, 0)),
                ],
                scratch_shapes=[
                    pltpu.VMEM((tile_rows, _LANE), jnp.float32),  # sum acc
                    pltpu.VMEM((tile_rows, _LANE), max_dtype),    # max acc
                ],
            ),
            compiler_params=pltpu.CompilerParams(
                dimension_semantics=("parallel", "arbitrary"),
                vmem_limit_bytes=vmem_limit,
            ),
            cost_estimate=pl.CostEstimate(
                flops=2 * rows_main * hw,
                transcendentals=0,
                bytes_accessed=rows_main * hw * itemsize
                + 2 * rows_main * itemsize,
            ),
        )(x2d)
        avg_rows = avg_out.reshape(-1)   # (rows_main,), already in row order
        max_rows = max_out.reshape(-1)

    if rows_main < rows:
        # Small row tail (< tile_rows channel planes): plain JAX, no pad copy.
        tail = x2d[rows_main:]
        tail_avg = (jnp.sum(tail.astype(jnp.float32), axis=-1) * inv_hw).astype(x.dtype)
        tail_max = jnp.max(tail, axis=-1)
        avg_rows = jnp.concatenate([avg_rows, tail_avg])
        max_rows = jnp.concatenate([max_rows, tail_max])

    avg_x = avg_rows.reshape(N, C, 1, 1)
    max_x = max_rows.reshape(N, C, 1, 1)
    # torch.cat([avg, max], dim=1)
    return jnp.concatenate([avg_x, max_x], axis=1)


if __name__ == "__main__":
    key = jax.random.PRNGKey(0)
    x = jax.random.normal(key, (2, 4, 16, 16), dtype=jnp.float32)

    out = adaptive_concat_pool2d(x)
    out = jax.block_until_ready(out)

    # Reference check in plain JAX.
    ref_avg = jnp.mean(x, axis=(2, 3), keepdims=True)
    ref_max = jnp.max(x, axis=(2, 3), keepdims=True)
    ref = jnp.concatenate([ref_avg, ref_max], axis=1)

    assert out.shape == (2, 8, 1, 1), out.shape
    assert jnp.allclose(out, ref, atol=1e-5, rtol=1e-5), "mismatch vs reference"
    print("KERNEL_OK")
</pallas_src>

<mosaic_0001>
module attributes {stable_mosaic.version = 11 : i64} {
  func.func @_concat_pool_kernel(%arg0: i32, %arg1: i32, %arg2: memref<8x256xf32, #tpu.memory_space<vmem>>, %arg3: memref<1x8xf32, #tpu.memory_space<vmem>>, %arg4: memref<1x8xf32, #tpu.memory_space<vmem>>, %arg5: memref<8x128xf32, #tpu.memory_space<vmem>>, %arg6: memref<8x128xf32, #tpu.memory_space<vmem>>) attributes {dimension_semantics = [#tpu.dimension_semantics<parallel>, #tpu.dimension_semantics<arbitrary>], iteration_bounds = array<i64: 1, 1>, scalar_prefetch = 0 : i64, scratch_operands = 2 : i64, tpu.core_type = #tpu.core_type<tc>, window_params = [{transform_indices = @transform_0, window_bounds = array<i64: 8, 256>}, {transform_indices = @transform_1, window_bounds = array<i64: 1, 8>}, {transform_indices = @transform_2, window_bounds = array<i64: 1, 8>}]} {
    %c0_i32 = arith.constant 0 : i32
    %0 = arith.cmpi eq, %arg1, %c0_i32 : i32
    %1 = arith.extui %0 : i1 to i32
    %c0_i32_0 = arith.constant 0 : i32
    %2 = arith.cmpi ne, %1, %c0_i32_0 : i32
    scf.if %2 {
      %cst = arith.constant 0.000000e+00 : f32
      %20 = vector.broadcast %cst : f32 to vector<8x128xf32>
      %c0_21 = arith.constant 0 : index
      %c0_22 = arith.constant 0 : index
      %21 = vector.load %arg5[%c0_21, %c0_22] : memref<8x128xf32, #tpu.memory_space<vmem>>, vector<8x128xf32>
      tpu.vector_store %arg5[%c0_21, %c0_22], %20 {strides = array<i32>} : memref<8x128xf32, #tpu.memory_space<vmem>>, vector<8x128xf32>,
      %cst_23 = arith.constant 0xFF800000 : f32
      %22 = vector.broadcast %cst_23 : f32 to vector<8x128xf32>
      %c0_24 = arith.constant 0 : index
      %c0_25 = arith.constant 0 : index
      %23 = vector.load %arg6[%c0_24, %c0_25] : memref<8x128xf32, #tpu.memory_space<vmem>>, vector<8x128xf32>
      tpu.vector_store %arg6[%c0_24, %c0_25], %22 {strides = array<i32>} : memref<8x128xf32, #tpu.memory_space<vmem>>, vector<8x128xf32>,
    } else {
    }
    %c0 = arith.constant 0 : index
    %c0_1 = arith.constant 0 : index
    %3 = vector.load %arg2[%c0, %c0_1] : memref<8x256xf32, #tpu.memory_space<vmem>>, vector<8x128xf32>
    %c0_2 = arith.constant 0 : index
    %c0_3 = arith.constant 0 : index
    %4 = vector.load %arg5[%c0_2, %c0_3] : memref<8x128xf32, #tpu.memory_space<vmem>>, vector<8x128xf32>
    %5 = arith.addf %4, %3 : vector<8x128xf32>
    %c0_4 = arith.constant 0 : index
    %c0_5 = arith.constant 0 : index
    %6 = vector.load %arg5[%c0_4, %c0_5] : memref<8x128xf32, #tpu.memory_space<vmem>>, vector<8x128xf32>
    tpu.vector_store %arg5[%c0_4, %c0_5], %5 {strides = array<i32>} : memref<8x128xf32, #tpu.memory_space<vmem>>, vector<8x128xf32>,
    %c0_6 = arith.constant 0 : index
    %c0_7 = arith.constant 0 : index
    %7 = vector.load %arg6[%c0_6, %c0_7] : memref<8x128xf32, #tpu.memory_space<vmem>>, vector<8x128xf32>
    %8 = arith.maximumf %7, %3 : vector<8x128xf32>
    %c0_8 = arith.constant 0 : index
    %c0_9 = arith.constant 0 : index
    %9 = vector.load %arg6[%c0_8, %c0_9] : memref<8x128xf32, #tpu.memory_space<vmem>>, vector<8x128xf32>
    tpu.vector_store %arg6[%c0_8, %c0_9], %8 {strides = array<i32>} : memref<8x128xf32, #tpu.memory_space<vmem>>, vector<8x128xf32>,
    %c0_10 = arith.constant 0 : index
    %c128 = arith.constant 128 : index
    %10 = vector.load %arg2[%c0_10, %c128] : memref<8x256xf32, #tpu.memory_space<vmem>>, vector<8x128xf32>
    %c0_11 = arith.constant 0 : index
    %c0_12 = arith.constant 0 : index
    %11 = vector.load %arg5[%c0_11, %c0_12] : memref<8x128xf32, #tpu.memory_space<vmem>>, vector<8x128xf32>
    %12 = arith.addf %11, %10 : vector<8x128xf32>
    %c0_13 = arith.constant 0 : index
    %c0_14 = arith.constant 0 : index
    %13 = vector.load %arg5[%c0_13, %c0_14] : memref<8x128xf32, #tpu.memory_space<vmem>>, vector<8x128xf32>
    tpu.vector_store %arg5[%c0_13, %c0_14], %12 {strides = array<i32>} : memref<8x128xf32, #tpu.memory_space<vmem>>, vector<8x128xf32>,
    %c0_15 = arith.constant 0 : index
    %c0_16 = arith.constant 0 : index
    %14 = vector.load %arg6[%c0_15, %c0_16] : memref<8x128xf32, #tpu.memory_space<vmem>>, vector<8x128xf32>
    %15 = arith.maximumf %14, %10 : vector<8x128xf32>
    %c0_17 = arith.constant 0 : index
    %c0_18 = arith.constant 0 : index
    %16 = vector.load %arg6[%c0_17, %c0_18] : memref<8x128xf32, #tpu.memory_space<vmem>>, vector<8x128xf32>
    tpu.vector_store %arg6[%c0_17, %c0_18], %15 {strides = array<i32>} : memref<8x128xf32, #tpu.memory_space<vmem>>, vector<8x128xf32>,
    %c0_i32_19 = arith.constant 0 : i32
    %17 = arith.cmpi eq, %arg1, %c0_i32_19 : i32
    %18 = arith.extui %17 : i1 to i32
    %c0_i32_20 = arith.constant 0 : i32
    %19 = arith.cmpi ne, %18, %c0_i32_20 : i32
    scf.if %19 {
      %c0_21 = arith.constant 0 : index
      %c0_22 = arith.constant 0 : index
      %20 = vector.load %arg5[%c0_21, %c0_22] : memref<8x128xf32, #tpu.memory_space<vmem>>, vector<8x128xf32>
      %cst = arith.constant dense<0.000000e+00> : vector<8xf32>
      %21 = vector.multi_reduction <add>, %20, %cst [1] : vector<8x128xf32> to vector<8xf32>
      %c0_23 = arith.constant 0 : index
      %c0_24 = arith.constant 0 : index
      %22 = vector.load %arg6[%c0_23, %c0_24] : memref<8x128xf32, #tpu.memory_space<vmem>>, vector<8x128xf32>
      %cst_25 = arith.constant dense<0xFF800000> : vector<8xf32>
      %23 = vector.multi_reduction <maximumf>, %22, %cst_25 [1] : vector<8x128xf32> to vector<8xf32>
      %cst_26 = arith.constant 3.906250e-03 : f32
      %24 = vector.broadcast %cst_26 : f32 to vector<8xf32>
      %25 = arith.mulf %21, %24 : vector<8xf32>
      %26 = vector.shape_cast %25 : vector<8xf32> to vector<1x8xf32>
      %c0_27 = arith.constant 0 : index
      %c0_28 = arith.constant 0 : index
      %27 = vector.load %arg3[%c0_27, %c0_28] : memref<1x8xf32, #tpu.memory_space<vmem>>, vector<1x8xf32>
      tpu.vector_store %arg3[%c0_27, %c0_28], %26 {strides = array<i32>} : memref<1x8xf32, #tpu.memory_space<vmem>>, vector<1x8xf32>,
      %28 = vector.shape_cast %23 : vector<8xf32> to vector<1x8xf32>
      %c0_29 = arith.constant 0 : index
      %c0_30 = arith.constant 0 : index
      %29 = vector.load %arg4[%c0_29, %c0_30] : memref<1x8xf32, #tpu.memory_space<vmem>>, vector<1x8xf32>
      tpu.vector_store %arg4[%c0_29, %c0_30], %28 {strides = array<i32>} : memref<1x8xf32, #tpu.memory_space<vmem>>, vector<1x8xf32>,
    } else {
    }
    return
  }
  func.func @transform_0(%arg0: i32, %arg1: i32) -> (i32, i32) {
    %c0_i32 = arith.constant 0 : i32
    return %arg0, %arg1 : i32, i32
  }
  func.func @transform_1(%arg0: i32, %arg1: i32) -> (i32, i32) {
    %c0_i32 = arith.constant 0 : i32
    %c0_i32_0 = arith.constant 0 : i32
    return %arg0, %c0_i32 : i32, i32
  }
  func.func @transform_2(%arg0: i32, %arg1: i32) -> (i32, i32) {
    %c0_i32 = arith.constant 0 : i32
    %c0_i32_0 = arith.constant 0 : i32
    return %arg0, %c0_i32 : i32, i32
  }
}

</mosaic_0001>

<llo_original>
// kernel: tpu_custom_call.1
$region0: #{tpu_custom_call.1}
  #allocation0 [shape = 'u32[]', space=smem, size = 0x4, offset = 0x4, fixed_abs, tag = 'smem constant byte address 0x4 - core index']
  #allocation1 [shape = 'u32[144,128]{1,0:T(1,128)}', space=vmem, size = 0x12000, scoped, tag = 'internal scratch']
  #allocation2 [shape = 'f32[8,128]{1,0:T(8,128)}', space=vmem, size = 0x1000, scoped, tag = 'scratch operand']
  #allocation3 [shape = 'f32[8,128]{1,0:T(8,128)}', space=vmem, size = 0x1000, scoped, tag = 'scratch operand']
  %s0 = inlined_call_operand.hbm [shape: f32[8,256], index: 0, kind: input, shape index: {}]
  %s1 = inlined_call_operand.hbm [shape: f32[1,8], index: 1, kind: output, shape index: {0}]
  %s2 = inlined_call_operand.hbm [shape: f32[1,8], index: 2, kind: output, shape index: {1}]
  %3 = xla_tuple %s1, %s2
  %s4 = sld [smem:[#allocation0]]
  $region34: #{tpu_custom_call.1} parent=0
    _
  %s6 = ssub.s32 1, %s4
  %s7 = scalar_select 0, %s6, %s4
  $region1: #{tpu_custom_call.1} parent=0
    #allocation4 [shape = 'u8[8192]{0}', space=vmem, size = 0x2000, scoped, tag = 'input window, operand 0, single buffered']
    #allocation5 [shape = 's32[1]{0}', space=sflag, size = 0x4, scoped, tag = 'scoped memory for tpu_custom_call.1']
    #allocation6 [shape = 's32[1]{0}', space=sflag, size = 0x4, scoped, tag = 'scoped memory for tpu_custom_call.1']
    #allocation7 [shape = 'u8[512]{0}', space=vmem, size = 0x400, scoped, tag = 'output window, operand 0, single buffered']
    #allocation8 [shape = 'u8[512]{0}', space=vmem, size = 0x400, scoped, tag = 'output window, operand 1, single buffered']
    #allocation9 [shape = 's32[1]{0}', space=sflag, size = 0x4, scoped, tag = 'scoped memory for tpu_custom_call.1']
    %8 = vsyncpa [#allocation5], 0
    %9 = vsyncpa [#allocation6], 0
    %10 = vsyncpa [#allocation9], 0
    // Predicated region
    $region2: #{tpu_custom_call.1} parent=1 // pred_check
      _
    $region3: #{tpu_custom_call.1} parent=1 // pred_check_branch
      %12 = sbr.rel (0) target = $region5
    $region4: #{tpu_custom_call.1} parent=1 // pred_region
      %s14 = ssub.s32 256, 256
      %15 = vsyncadd [#allocation5], %s14
      %s17 = sshll.u32 [#allocation4], 4
      %s18 = int_to_ptr.vmem [resolvable:$true] %s17
      %20 = dma.hbm_to_vmem [thread:$0]  %s0, 256, %s18, [#allocation5]
    $region5: #{tpu_custom_call.1} parent=1 // pred_fallthru
      _
    // Predicated region
    $region6: #{tpu_custom_call.1} parent=1 // pred_check
      _
    $region7: #{tpu_custom_call.1} parent=1 // pred_check_branch
      %22 = sbr.rel (0) target = $region9
    $region8: #{tpu_custom_call.1} parent=1 // pred_region
      %23 = dma.done [#allocation5], 256
    $region9: #{tpu_custom_call.1} parent=1 // pred_fallthru
      _
    %p24 = scmp.eq.s32.totalorder 0, 0
    // Predicated region
    $region10: #{tpu_custom_call.1} parent=1 // pred_check
      %p25 = pneg %p24
    $region11: #{tpu_custom_call.1} parent=1 // pred_check_branch
      %27 = sbr.rel (%p25) target = $region13
    $region12: #{tpu_custom_call.1} parent=1 // pred_region
      %28 = vst [vmem:[#allocation2] sm:$0xff] 0.0
      %29 = vst [vmem:[#allocation3] sm:$0xff] -inf
    $region13: #{tpu_custom_call.1} parent=1 // pred_fallthru
      _
    %v30 = vld [vmem:[#allocation4] sm:$0xff]
    %v31 = vld [vmem:[#allocation2] sm:$0xff]
    %v32 = vadd.f32 %v31, %v30
    %33 = vst [vmem:[#allocation2] sm:$0xff] %v32
    %v34 = vld [vmem:[#allocation3] sm:$0xff]
    %v35 = vmax.f32 %v34, %v30
    %36 = vst [vmem:[#allocation3] sm:$0xff] %v35
    %v37 = vld [vmem:[#allocation4 + $0x8] sm:$0xff]
    %v38 = vld [vmem:[#allocation2] sm:$0xff]
    %v39 = vadd.f32 %v38, %v37
    %40 = vst [vmem:[#allocation2] sm:$0xff] %v39
    %v41 = vld [vmem:[#allocation3] sm:$0xff]
    %v42 = vmax.f32 %v41, %v37
    %43 = vst [vmem:[#allocation3] sm:$0xff] %v42
    // Predicated region
    $region14: #{tpu_custom_call.1} parent=1 // pred_check
      %p44 = pneg %p24
    $region15: #{tpu_custom_call.1} parent=1 // pred_check_branch
      %46 = sbr.rel (%p44) target = $region17
    $region16: #{tpu_custom_call.1} parent=1 // pred_region
      %v47 = vld [vmem:[#allocation2] sm:$0xff]
      %48 = vadd.xlane.f32.xlu0 %v47
      %v49 = vpop.xlane.xlu0 %48
      %v50 = vld [vmem:[#allocation3] sm:$0xff]
      %51 = vmax.xlane.f32.xlu0 %v50
      %v52 = vpop.xlane.xlu0 %51
      %v53 = vmul.f32 %v49, 0.00390625
      %v55 = vlaneseq
      %v56 = vand.u32 %v55, 127
      %v57 = vlaneseq
      %v58 = vshrl.u32 %v57, 7
      %v59 = vsub.s32 %v56, %v58
      %v60 = vrot.slane %v53, %v59
      %vm62 = vcmask 57344
      %63 = vst.msk [vmem:[#allocation7] sm:$0x1] %vm62, %v60
      %v65 = vlaneseq
      %v66 = vshrl.u32 %v65, 7
      %v67 = vsub.s32 %v56, %v66
      %v68 = vrot.slane %v52, %v67
      %70 = vst.msk [vmem:[#allocation8] sm:$0x1] %vm62, %v68
    $region17: #{tpu_custom_call.1} parent=1 // pred_fallthru
      _
    // Predicated region
    $region18: #{tpu_custom_call.1} parent=1 // pred_check
      _
    $region19: #{tpu_custom_call.1} parent=1 // pred_check_branch
      %72 = sbr.rel (0) target = $region21
    $region20: #{tpu_custom_call.1} parent=1 // pred_region
      %s74 = ssub.s32 16, 16
      %75 = vsyncadd [#allocation6], %s74
      %s77 = sshll.u32 [#allocation7], 4
      %s78 = int_to_ptr.vmem [resolvable:$true] %s77
      %80 = dma.vmem_to_hbm [thread:$0]  %s78, 16, %s1, [#allocation6]
    $region21: #{tpu_custom_call.1} parent=1 // pred_fallthru
      _
    // Predicated region
    $region22: #{tpu_custom_call.1} parent=1 // pred_check
      _
    $region23: #{tpu_custom_call.1} parent=1 // pred_check_branch
      %82 = sbr.rel (0) target = $region25
    $region24: #{tpu_custom_call.1} parent=1 // pred_region
      %s84 = ssub.s32 16, 16
      %85 = vsyncadd [#allocation9], %s84
      %s87 = sshll.u32 [#allocation8], 4
      %s88 = int_to_ptr.vmem [resolvable:$true] %s87
      %90 = dma.vmem_to_hbm [thread:$0]  %s88, 16, %s2, [#allocation9]
    $region25: #{tpu_custom_call.1} parent=1 // pred_fallthru
      _
    // Predicated region
    $region26: #{tpu_custom_call.1} parent=1 // pred_check
      _
    $region27: #{tpu_custom_call.1} parent=1 // pred_check_branch
      %92 = sbr.rel (0) target = $region29
    $region28: #{tpu_custom_call.1} parent=1 // pred_region
      %93 = dma.done [#allocation6], 16
    $region29: #{tpu_custom_call.1} parent=1 // pred_fallthru
      _
    // Predicated region
    $region30: #{tpu_custom_call.1} parent=1 // pred_check
      _
    $region31: #{tpu_custom_call.1} parent=1 // pred_check_branch
      %95 = sbr.rel (0) target = $region33
    $region32: #{tpu_custom_call.1} parent=1 // pred_region
      %96 = dma.done [#allocation9], 16
    $region33: #{tpu_custom_call.1} parent=1 // pred_fallthru
      _
    %97 = vsyncpa [#allocation5], 1
    %98 = vsyncpa [#allocation6], 1
    %99 = vsyncpa [#allocation9], 1

</llo_original>
